<compile_context>
chip_gen: v6e
topology: v6e:2x2x1
jax: 0.10.0
libtpu: 0.0.40
codegen_flags: <defaults>
</compile_context>

<pallas_src>
import jax
import jax.numpy as jnp
from jax.experimental import pallas as pl
from jax.experimental.pallas import tpu as pltpu

_LANE = 128


def _add_relu_kernel(a_ref, b_ref, o_ref):
    # out = relu(a + b). Weak-typed 0.0 preserves the input dtype.
    o_ref[...] = jnp.maximum(a_ref[...] + b_ref[...], 0.0)


def _round_up(x, m):
    return -(-x // m) * m


def _sublane_quantum(itemsize):
    # f32 -> 8 rows per vreg, bf16 -> 16, int8/fp8 -> 32 (sub-32-bit dtypes
    # pack along sublanes; aligning keeps every vreg row full / stores unmasked).
    return max(8, 32 // itemsize)


def _tile_budget():
    """(per-buffer tile byte budget, scoped VMEM limit) — generation aware."""
    phys_vmem = None
    try:
        phys_vmem = getattr(pltpu.get_tpu_info(), "vmem_capacity_bytes", None)
    except Exception:
        phys_vmem = None
    if phys_vmem is not None and phys_vmem > 64 * 1024 * 1024:
        # v5e / v6e: 128 MiB physical VMEM -> bigger tiles, fewer grid steps.
        # 3 buffers (a, b, out) x 2-deep x 6 MiB = 36 MiB < 48 MiB scoped limit.
        return 6 * 1024 * 1024, 48 * 1024 * 1024
    # v7x (64 MiB physical) or unknown chip: conservative but >= every default.
    # 3 x 2 x 2 MiB = 12 MiB < 32 MiB scoped limit.
    return 2 * 1024 * 1024, 32 * 1024 * 1024


def _plan_layout(total, itemsize, budget_bytes):
    """Returns (padded_total, rows, cols, block_cols, grid_cols).

    rows is the dtype's packed-sublane quantum; cols = padded_total // rows is a
    multiple of 128 (lane-dense).  Tile along cols only when a whole-array block
    exceeds the per-buffer budget, preferring an even split so no grid step runs
    masked partial stores / short DMAs.
    """
    rows = _sublane_quantum(itemsize)
    padded_total = _round_up(total, rows * _LANE)
    cols = padded_total // rows          # multiple of 128 by construction
    c128 = cols // _LANE                 # number of (rows, 128) lane groups
    per_buffer_bytes = padded_total * itemsize

    if per_buffer_bytes <= budget_bytes:
        # Whole array as one block: zero per-step overhead for small tensors.
        return padded_total, rows, cols, cols, 1

    group_bytes = rows * _LANE * itemsize
    max_groups = max(1, budget_bytes // group_bytes)
    cand = min(max_groups, c128)
    lo = max(1, cand // 2)
    g = None
    while cand >= lo:                    # prefer a block width that divides cols
        if c128 % cand == 0:
            g = cand
            break
        cand -= 1
    if g is None:                        # accept a ragged (masked) last block
        g = min(max_groups, c128)
    block_cols = g * _LANE
    grid_cols = pl.cdiv(c128, g)
    return padded_total, rows, cols, block_cols, grid_cols


def add_relu(x53, x48):
    """Computes relu(x53 + x48) with one Pallas TPU kernel (HBM-bound elementwise)."""
    assert x53.shape == x48.shape and x53.dtype == x48.dtype
    orig_shape = x53.shape
    total = x53.size
    itemsize = jnp.dtype(x53.dtype).itemsize
    budget_bytes, vmem_limit = _tile_budget()

    padded_total, rows, cols, block_cols, grid_cols = _plan_layout(
        total, itemsize, budget_bytes
    )

    a = x53.reshape(-1)
    b = x48.reshape(-1)
    if padded_total != total:
        # Pad to a full lane-dense slab so every store stays unmasked; the
        # padded tail (relu(0 + 0) = 0) is sliced off below.
        pad = padded_total - total
        a = jnp.pad(a, (0, pad))
        b = jnp.pad(b, (0, pad))
    a2d = a.reshape(rows, cols)
    b2d = b.reshape(rows, cols)

    out2d = pl.pallas_call(
        _add_relu_kernel,
        out_shape=jax.ShapeDtypeStruct((rows, cols), x53.dtype),
        grid=(grid_cols,),
        in_specs=[
            pl.BlockSpec((rows, block_cols), lambda i: (0, i)),
            pl.BlockSpec((rows, block_cols), lambda i: (0, i)),
        ],
        out_specs=pl.BlockSpec((rows, block_cols), lambda i: (0, i)),
        compiler_params=pltpu.CompilerParams(
            # Independent tiles: a multi-step grid can shard across both v7x
            # TensorCores; harmless on single-TC v5e/v6e.
            dimension_semantics=("parallel",),
            vmem_limit_bytes=vmem_limit,
        ),
    )(a2d, b2d)
    # TODO(synk): for very large inputs a pipeline_mode=pl.Buffered(3) sweep on
    # the input specs may add a few %; left at the default depth here.

    out = out2d.reshape(-1)
    if padded_total != total:
        out = out[:total]
    return out.reshape(orig_shape)


if __name__ == "__main__":
    key = jax.random.PRNGKey(0)
    k1, k2 = jax.random.split(key)
    # Shape matches the module's example tensors ([1, 128, 28, 28]).
    shape = (1, 128, 28, 28)
    x53 = jax.random.normal(k1, shape, dtype=jnp.float32)
    x48 = jax.random.normal(k2, shape, dtype=jnp.float32)

    out = jax.block_until_ready(add_relu(x53, x48))

    # Reference check (plain JAX) to validate semantics.
    ref = jnp.maximum(x53 + x48, 0.0)
    assert out.shape == ref.shape
    assert jnp.allclose(out, ref), "mismatch vs reference"

    print("KERNEL_OK")
</pallas_src>

<mosaic_0001>
module attributes {stable_mosaic.version = 11 : i64} {
  func.func @_add_relu_kernel(%arg0: i32, %arg1: memref<8x12544xf32, #tpu.memory_space<vmem>>, %arg2: memref<8x12544xf32, #tpu.memory_space<vmem>>, %arg3: memref<8x12544xf32, #tpu.memory_space<vmem>>) attributes {dimension_semantics = [#tpu.dimension_semantics<parallel>], iteration_bounds = array<i64: 1>, scalar_prefetch = 0 : i64, scratch_operands = 0 : i64, tpu.core_type = #tpu.core_type<tc>, window_params = [{transform_indices = @transform_0, window_bounds = array<i64: 8, 12544>}, {transform_indices = @transform_1, window_bounds = array<i64: 8, 12544>}, {transform_indices = @transform_2, window_bounds = array<i64: 8, 12544>}]} {
    %c0 = arith.constant 0 : index
    %c0_0 = arith.constant 0 : index
    %0 = vector.load %arg1[%c0, %c0_0] : memref<8x12544xf32, #tpu.memory_space<vmem>>, vector<8x12544xf32>
    %c0_1 = arith.constant 0 : index
    %c0_2 = arith.constant 0 : index
    %1 = vector.load %arg2[%c0_1, %c0_2] : memref<8x12544xf32, #tpu.memory_space<vmem>>, vector<8x12544xf32>
    %2 = arith.addf %0, %1 : vector<8x12544xf32>
    %cst = arith.constant 0.000000e+00 : f32
    %3 = vector.broadcast %cst : f32 to vector<8x12544xf32>
    %4 = arith.maximumf %2, %3 : vector<8x12544xf32>
    %c0_3 = arith.constant 0 : index
    %c0_4 = arith.constant 0 : index
    %5 = vector.load %arg3[%c0_3, %c0_4] : memref<8x12544xf32, #tpu.memory_space<vmem>>, vector<8x12544xf32>
    tpu.vector_store %arg3[%c0_3, %c0_4], %4 {strides = array<i32>} : memref<8x12544xf32, #tpu.memory_space<vmem>>, vector<8x12544xf32>,
    return
  }
  func.func @transform_0(%arg0: i32) -> (i32, i32) {
    %c0_i32 = arith.constant 0 : i32
    %c0_i32_0 = arith.constant 0 : i32
    return %c0_i32, %arg0 : i32, i32
  }
  func.func @transform_1(%arg0: i32) -> (i32, i32) {
    %c0_i32 = arith.constant 0 : i32
    %c0_i32_0 = arith.constant 0 : i32
    return %c0_i32, %arg0 : i32, i32
  }
  func.func @transform_2(%arg0: i32) -> (i32, i32) {
    %c0_i32 = arith.constant 0 : i32
    %c0_i32_0 = arith.constant 0 : i32
    return %c0_i32, %arg0 : i32, i32
  }
}

</mosaic_0001>

<llo_original>
// kernel: tpu_custom_call.1
$region0: #{tpu_custom_call.1}
  #allocation0 [shape = 'u32[]', space=smem, size = 0x4, offset = 0x4, fixed_abs, tag = 'smem constant byte address 0x4 - core index']
  #allocation1 [shape = 'u32[144,128]{1,0:T(1,128)}', space=vmem, size = 0x12000, scoped, tag = 'internal scratch']
  %s0 = inlined_call_operand.hbm [shape: f32[8,12544], index: 0, kind: input, shape index: {}]
  %s1 = inlined_call_operand.hbm [shape: f32[8,12544], index: 1, kind: input, shape index: {}]
  %s2 = inlined_call_operand.hbm [shape: f32[8,12544], index: 2, kind: output, shape index: {}]
  %s3 = sld [smem:[#allocation0]]
  $region26: #{tpu_custom_call.1} parent=0
    _
  %s5 = ssub.s32 1, %s3
  %s6 = scalar_select 0, %s5, %s3
  $region1: #{tpu_custom_call.1} parent=0
    #allocation2 [shape = 'u8[401408]{0}', space=vmem, size = 0x62000, scoped, tag = 'input window, operand 0, single buffered']
    #allocation3 [shape = 's32[1]{0}', space=sflag, size = 0x4, scoped, tag = 'scoped memory for tpu_custom_call.1']
    #allocation4 [shape = 's32[1]{0}', space=sflag, size = 0x4, scoped, tag = 'scoped memory for tpu_custom_call.1']
    #allocation5 [shape = 'u8[401408]{0}', space=vmem, size = 0x62000, scoped, tag = 'input window, operand 1, single buffered']
    #allocation6 [shape = 's32[1]{0}', space=sflag, size = 0x4, scoped, tag = 'scoped memory for tpu_custom_call.1']
    #allocation7 [shape = 'u8[401408]{0}', space=vmem, size = 0x62000, scoped, tag = 'output window, operand 0, single buffered']
    %7 = vsyncpa [#allocation3], 0
    %8 = vsyncpa [#allocation6], 0
    %9 = vsyncpa [#allocation4], 0
    // Predicated region
    $region2: #{tpu_custom_call.1} parent=1 // pred_check
      _
    $region3: #{tpu_custom_call.1} parent=1 // pred_check_branch
      %11 = sbr.rel (0) target = $region5
    $region4: #{tpu_custom_call.1} parent=1 // pred_region
      %s13 = ssub.s32 12544, 12544
      %14 = vsyncadd [#allocation3], %s13
      %s16 = sshll.u32 [#allocation2], 4
      %s17 = int_to_ptr.vmem [resolvable:$true] %s16
      %19 = dma.hbm_to_vmem [thread:$0]  %s0, 12544, %s17, [#allocation3]
    $region5: #{tpu_custom_call.1} parent=1 // pred_fallthru
      _
    // Predicated region
    $region6: #{tpu_custom_call.1} parent=1 // pred_check
      _
    $region7: #{tpu_custom_call.1} parent=1 // pred_check_branch
      %21 = sbr.rel (0) target = $region9
    $region8: #{tpu_custom_call.1} parent=1 // pred_region
      %s23 = ssub.s32 12544, 12544
      %24 = vsyncadd [#allocation6], %s23
      %s26 = sshll.u32 [#allocation5], 4
      %s27 = int_to_ptr.vmem [resolvable:$true] %s26
      %29 = dma.hbm_to_vmem [thread:$0]  %s1, 12544, %s27, [#allocation6]
    $region9: #{tpu_custom_call.1} parent=1 // pred_fallthru
      _
    // Predicated region
    $region10: #{tpu_custom_call.1} parent=1 // pred_check
      _
    $region11: #{tpu_custom_call.1} parent=1 // pred_check_branch
      %31 = sbr.rel (0) target = $region13
    $region12: #{tpu_custom_call.1} parent=1 // pred_region
      %32 = dma.done [#allocation3], 12544
    $region13: #{tpu_custom_call.1} parent=1 // pred_fallthru
      _
    // Predicated region
    $region14: #{tpu_custom_call.1} parent=1 // pred_check
      _
    $region15: #{tpu_custom_call.1} parent=1 // pred_check_branch
      %34 = sbr.rel (0) target = $region17
    $region16: #{tpu_custom_call.1} parent=1 // pred_region
      %35 = dma.done [#allocation6], 12544
    $region17: #{tpu_custom_call.1} parent=1 // pred_fallthru
      _
    %v36 = vld [vmem:[#allocation2] sm:$0xff]
    %v37 = vld [vmem:[#allocation2 + $0x8] sm:$0xff]
    %v38 = vld [vmem:[#allocation2 + $0x10] sm:$0xff]
    %v39 = vld [vmem:[#allocation2 + $0x18] sm:$0xff]
    %v40 = vld [vmem:[#allocation2 + $0x20] sm:$0xff]
    %v41 = vld [vmem:[#allocation2 + $0x28] sm:$0xff]
    %v42 = vld [vmem:[#allocation2 + $0x30] sm:$0xff]
    %v43 = vld [vmem:[#allocation2 + $0x38] sm:$0xff]
    %v44 = vld [vmem:[#allocation2 + $0x40] sm:$0xff]
    %v45 = vld [vmem:[#allocation2 + $0x48] sm:$0xff]
    %v46 = vld [vmem:[#allocation2 + $0x50] sm:$0xff]
    %v47 = vld [vmem:[#allocation2 + $0x58] sm:$0xff]
    %v48 = vld [vmem:[#allocation2 + $0x60] sm:$0xff]
    %v49 = vld [vmem:[#allocation2 + $0x68] sm:$0xff]
    %v50 = vld [vmem:[#allocation2 + $0x70] sm:$0xff]
    %v51 = vld [vmem:[#allocation2 + $0x78] sm:$0xff]
    %v52 = vld [vmem:[#allocation2 + $0x80] sm:$0xff]
    %v53 = vld [vmem:[#allocation2 + $0x88] sm:$0xff]
    %v54 = vld [vmem:[#allocation2 + $0x90] sm:$0xff]
    %v55 = vld [vmem:[#allocation2 + $0x98] sm:$0xff]
    %v56 = vld [vmem:[#allocation2 + $0xa0] sm:$0xff]
    %v57 = vld [vmem:[#allocation2 + $0xa8] sm:$0xff]
    %v58 = vld [vmem:[#allocation2 + $0xb0] sm:$0xff]
    %v59 = vld [vmem:[#allocation2 + $0xb8] sm:$0xff]
    %v60 = vld [vmem:[#allocation2 + $0xc0] sm:$0xff]
    %v61 = vld [vmem:[#allocation2 + $0xc8] sm:$0xff]
    %v62 = vld [vmem:[#allocation2 + $0xd0] sm:$0xff]
    %v63 = vld [vmem:[#allocation2 + $0xd8] sm:$0xff]
    %v64 = vld [vmem:[#allocation2 + $0xe0] sm:$0xff]
    %v65 = vld [vmem:[#allocation2 + $0xe8] sm:$0xff]
    %v66 = vld [vmem:[#allocation2 + $0xf0] sm:$0xff]
    %v67 = vld [vmem:[#allocation2 + $0xf8] sm:$0xff]
    %v68 = vld [vmem:[#allocation2 + $0x100] sm:$0xff]
    %v69 = vld [vmem:[#allocation2 + $0x108] sm:$0xff]
    %v70 = vld [vmem:[#allocation2 + $0x110] sm:$0xff]
    %v71 = vld [vmem:[#allocation2 + $0x118] sm:$0xff]
    %v72 = vld [vmem:[#allocation2 + $0x120] sm:$0xff]
    %v73 = vld [vmem:[#allocation2 + $0x128] sm:$0xff]
    %v74 = vld [vmem:[#allocation2 + $0x130] sm:$0xff]
    %v75 = vld [vmem:[#allocation2 + $0x138] sm:$0xff]
    %v76 = vld [vmem:[#allocation2 + $0x140] sm:$0xff]
    %v77 = vld [vmem:[#allocation2 + $0x148] sm:$0xff]
    %v78 = vld [vmem:[#allocation2 + $0x150] sm:$0xff]
    %v79 = vld [vmem:[#allocation2 + $0x158] sm:$0xff]
    %v80 = vld [vmem:[#allocation2 + $0x160] sm:$0xff]
    %v81 = vld [vmem:[#allocation2 + $0x168] sm:$0xff]
    %v82 = vld [vmem:[#allocation2 + $0x170] sm:$0xff]
    %v83 = vld [vmem:[#allocation2 + $0x178] sm:$0xff]
    %v84 = vld [vmem:[#allocation2 + $0x180] sm:$0xff]
    %v85 = vld [vmem:[#allocation2 + $0x188] sm:$0xff]
    %v86 = vld [vmem:[#allocation2 + $0x190] sm:$0xff]
    %v87 = vld [vmem:[#allocation2 + $0x198] sm:$0xff]
    %v88 = vld [vmem:[#allocation2 + $0x1a0] sm:$0xff]
    %v89 = vld [vmem:[#allocation2 + $0x1a8] sm:$0xff]
    %v90 = vld [vmem:[#allocation2 + $0x1b0] sm:$0xff]
    %v91 = vld [vmem:[#allocation2 + $0x1b8] sm:$0xff]
    %v92 = vld [vmem:[#allocation2 + $0x1c0] sm:$0xff]
    %v93 = vld [vmem:[#allocation2 + $0x1c8] sm:$0xff]
    %v94 = vld [vmem:[#allocation2 + $0x1d0] sm:$0xff]
    %v95 = vld [vmem:[#allocation2 + $0x1d8] sm:$0xff]
    %v96 = vld [vmem:[#allocation2 + $0x1e0] sm:$0xff]
    %v97 = vld [vmem:[#allocation2 + $0x1e8] sm:$0xff]
    %v98 = vld [vmem:[#allocation2 + $0x1f0] sm:$0xff]
    %v99 = vld [vmem:[#allocation2 + $0x1f8] sm:$0xff]
    %v100 = vld [vmem:[#allocation2 + $0x200] sm:$0xff]
    %v101 = vld [vmem:[#allocation2 + $0x208] sm:$0xff]
    %v102 = vld [vmem:[#allocation2 + $0x210] sm:$0xff]
    %v103 = vld [vmem:[#allocation2 + $0x218] sm:$0xff]
    %v104 = vld [vmem:[#allocation2 + $0x220] sm:$0xff]
    %v105 = vld [vmem:[#allocation2 + $0x228] sm:$0xff]
    %v106 = vld [vmem:[#allocation2 + $0x230] sm:$0xff]
    %v107 = vld [vmem:[#allocation2 + $0x238] sm:$0xff]
    %v108 = vld [vmem:[#allocation2 + $0x240] sm:$0xff]
    %v109 = vld [vmem:[#allocation2 + $0x248] sm:$0xff]
    %v110 = vld [vmem:[#allocation2 + $0x250] sm:$0xff]
    %v111 = vld [vmem:[#allocation2 + $0x258] sm:$0xff]
    %v112 = vld [vmem:[#allocation2 + $0x260] sm:$0xff]
    %v113 = vld [vmem:[#allocation2 + $0x268] sm:$0xff]
    %v114 = vld [vmem:[#allocation2 + $0x270] sm:$0xff]
    %v115 = vld [vmem:[#allocation2 + $0x278] sm:$0xff]
    %v116 = vld [vmem:[#allocation2 + $0x280] sm:$0xff]
    %v117 = vld [vmem:[#allocation2 + $0x288] sm:$0xff]
    %v118 = vld [vmem:[#allocation2 + $0x290] sm:$0xff]
    %v119 = vld [vmem:[#allocation2 + $0x298] sm:$0xff]
    %v120 = vld [vmem:[#allocation2 + $0x2a0] sm:$0xff]
    %v121 = vld [vmem:[#allocation2 + $0x2a8] sm:$0xff]
    %v122 = vld [vmem:[#allocation2 + $0x2b0] sm:$0xff]
    %v123 = vld [vmem:[#allocation2 + $0x2b8] sm:$0xff]
    %v124 = vld [vmem:[#allocation2 + $0x2c0] sm:$0xff]
    %v125 = vld [vmem:[#allocation2 + $0x2c8] sm:$0xff]
    %v126 = vld [vmem:[#allocation2 + $0x2d0] sm:$0xff]
    %v127 = vld [vmem:[#allocation2 + $0x2d8] sm:$0xff]
    %v128 = vld [vmem:[#allocation2 + $0x2e0] sm:$0xff]
    %v129 = vld [vmem:[#allocation2 + $0x2e8] sm:$0xff]
    %v130 = vld [vmem:[#allocation2 + $0x2f0] sm:$0xff]
    %v131 = vld [vmem:[#allocation2 + $0x2f8] sm:$0xff]
    %v132 = vld [vmem:[#allocation2 + $0x300] sm:$0xff]
    %v133 = vld [vmem:[#allocation2 + $0x308] sm:$0xff]
    %v134 = vld [vmem:[#allocation5] sm:$0xff]
    %v135 = vld [vmem:[#allocation5 + $0x8] sm:$0xff]
    %v136 = vld [vmem:[#allocation5 + $0x10] sm:$0xff]
    %v137 = vld [vmem:[#allocation5 + $0x18] sm:$0xff]
    %v138 = vld [vmem:[#allocation5 + $0x20] sm:$0xff]
    %v139 = vld [vmem:[#allocation5 + $0x28] sm:$0xff]
    %v140 = vld [vmem:[#allocation5 + $0x30] sm:$0xff]
    %v141 = vld [vmem:[#allocation5 + $0x38] sm:$0xff]
    %v142 = vld [vmem:[#allocation5 + $0x40] sm:$0xff]
    %v143 = vld [vmem:[#allocation5 + $0x48] sm:$0xff]
    %v144 = vld [vmem:[#allocation5 + $0x50] sm:$0xff]
    %v145 = vld [vmem:[#allocation5 + $0x58] sm:$0xff]
    %v146 = vld [vmem:[#allocation5 + $0x60] sm:$0xff]
    %v147 = vld [vmem:[#allocation5 + $0x68] sm:$0xff]
    %v148 = vld [vmem:[#allocation5 + $0x70] sm:$0xff]
    %v149 = vld [vmem:[#allocation5 + $0x78] sm:$0xff]
    %v150 = vld [vmem:[#allocation5 + $0x80] sm:$0xff]
    %v151 = vld [vmem:[#allocation5 + $0x88] sm:$0xff]
    %v152 = vld [vmem:[#allocation5 + $0x90] sm:$0xff]
    %v153 = vld [vmem:[#allocation5 + $0x98] sm:$0xff]
    %v154 = vld [vmem:[#allocation5 + $0xa0] sm:$0xff]
    %v155 = vld [vmem:[#allocation5 + $0xa8] sm:$0xff]
    %v156 = vld [vmem:[#allocation5 + $0xb0] sm:$0xff]
    %v157 = vld [vmem:[#allocation5 + $0xb8] sm:$0xff]
    %v158 = vld [vmem:[#allocation5 + $0xc0] sm:$0xff]
    %v159 = vld [vmem:[#allocation5 + $0xc8] sm:$0xff]
    %v160 = vld [vmem:[#allocation5 + $0xd0] sm:$0xff]
    %v161 = vld [vmem:[#allocation5 + $0xd8] sm:$0xff]
    %v162 = vld [vmem:[#allocation5 + $0xe0] sm:$0xff]
    %v163 = vld [vmem:[#allocation5 + $0xe8] sm:$0xff]
    %v164 = vld [vmem:[#allocation5 + $0xf0] sm:$0xff]
    %v165 = vld [vmem:[#allocation5 + $0xf8] sm:$0xff]
    %v166 = vld [vmem:[#allocation5 + $0x100] sm:$0xff]
    %v167 = vld [vmem:[#allocation5 + $0x108] sm:$0xff]
    %v168 = vld [vmem:[#allocation5 + $0x110] sm:$0xff]
    %v169 = vld [vmem:[#allocation5 + $0x118] sm:$0xff]
    %v170 = vld [vmem:[#allocation5 + $0x120] sm:$0xff]
    %v171 = vld [vmem:[#allocation5 + $0x128] sm:$0xff]
    %v172 = vld [vmem:[#allocation5 + $0x130] sm:$0xff]
    %v173 = vld [vmem:[#allocation5 + $0x138] sm:$0xff]
    %v174 = vld [vmem:[#allocation5 + $0x140] sm:$0xff]
    %v175 = vld [vmem:[#allocation5 + $0x148] sm:$0xff]
    %v176 = vld [vmem:[#allocation5 + $0x150] sm:$0xff]
    %v177 = vld [vmem:[#allocation5 + $0x158] sm:$0xff]
    %v178 = vld [vmem:[#allocation5 + $0x160] sm:$0xff]
    %v179 = vld [vmem:[#allocation5 + $0x168] sm:$0xff]
    %v180 = vld [vmem:[#allocation5 + $0x170] sm:$0xff]
    %v181 = vld [vmem:[#allocation5 + $0x178] sm:$0xff]
    %v182 = vld [vmem:[#allocation5 + $0x180] sm:$0xff]
    %v183 = vld [vmem:[#allocation5 + $0x188] sm:$0xff]
    %v184 = vld [vmem:[#allocation5 + $0x190] sm:$0xff]
    %v185 = vld [vmem:[#allocation5 + $0x198] sm:$0xff]
    %v186 = vld [vmem:[#allocation5 + $0x1a0] sm:$0xff]
    %v187 = vld [vmem:[#allocation5 + $0x1a8] sm:$0xff]
    %v188 = vld [vmem:[#allocation5 + $0x1b0] sm:$0xff]
    %v189 = vld [vmem:[#allocation5 + $0x1b8] sm:$0xff]
    %v190 = vld [vmem:[#allocation5 + $0x1c0] sm:$0xff]
    %v191 = vld [vmem:[#allocation5 + $0x1c8] sm:$0xff]
    %v192 = vld [vmem:[#allocation5 + $0x1d0] sm:$0xff]
    %v193 = vld [vmem:[#allocation5 + $0x1d8] sm:$0xff]
    %v194 = vld [vmem:[#allocation5 + $0x1e0] sm:$0xff]
    %v195 = vld [vmem:[#allocation5 + $0x1e8] sm:$0xff]
    %v196 = vld [vmem:[#allocation5 + $0x1f0] sm:$0xff]
    %v197 = vld [vmem:[#allocation5 + $0x1f8] sm:$0xff]
    %v198 = vld [vmem:[#allocation5 + $0x200] sm:$0xff]
    %v199 = vld [vmem:[#allocation5 + $0x208] sm:$0xff]
    %v200 = vld [vmem:[#allocation5 + $0x210] sm:$0xff]
    %v201 = vld [vmem:[#allocation5 + $0x218] sm:$0xff]
    %v202 = vld [vmem:[#allocation5 + $0x220] sm:$0xff]
    %v203 = vld [vmem:[#allocation5 + $0x228] sm:$0xff]
    %v204 = vld [vmem:[#allocation5 + $0x230] sm:$0xff]
    %v205 = vld [vmem:[#allocation5 + $0x238] sm:$0xff]
    %v206 = vld [vmem:[#allocation5 + $0x240] sm:$0xff]
    %v207 = vld [vmem:[#allocation5 + $0x248] sm:$0xff]
    %v208 = vld [vmem:[#allocation5 + $0x250] sm:$0xff]
    %v209 = vld [vmem:[#allocation5 + $0x258] sm:$0xff]
    %v210 = vld [vmem:[#allocation5 + $0x260] sm:$0xff]
    %v211 = vld [vmem:[#allocation5 + $0x268] sm:$0xff]
    %v212 = vld [vmem:[#allocation5 + $0x270] sm:$0xff]
    %v213 = vld [vmem:[#allocation5 + $0x278] sm:$0xff]
    %v214 = vld [vmem:[#allocation5 + $0x280] sm:$0xff]
    %v215 = vld [vmem:[#allocation5 + $0x288] sm:$0xff]
    %v216 = vld [vmem:[#allocation5 + $0x290] sm:$0xff]
    %v217 = vld [vmem:[#allocation5 + $0x298] sm:$0xff]
    %v218 = vld [vmem:[#allocation5 + $0x2a0] sm:$0xff]
    %v219 = vld [vmem:[#allocation5 + $0x2a8] sm:$0xff]
    %v220 = vld [vmem:[#allocation5 + $0x2b0] sm:$0xff]
    %v221 = vld [vmem:[#allocation5 + $0x2b8] sm:$0xff]
    %v222 = vld [vmem:[#allocation5 + $0x2c0] sm:$0xff]
    %v223 = vld [vmem:[#allocation5 + $0x2c8] sm:$0xff]
    %v224 = vld [vmem:[#allocation5 + $0x2d0] sm:$0xff]
    %v225 = vld [vmem:[#allocation5 + $0x2d8] sm:$0xff]
    %v226 = vld [vmem:[#allocation5 + $0x2e0] sm:$0xff]
    %v227 = vld [vmem:[#allocation5 + $0x2e8] sm:$0xff]
    %v228 = vld [vmem:[#allocation5 + $0x2f0] sm:$0xff]
    %v229 = vld [vmem:[#allocation5 + $0x2f8] sm:$0xff]
    %v230 = vld [vmem:[#allocation5 + $0x300] sm:$0xff]
    %v231 = vld [vmem:[#allocation5 + $0x308] sm:$0xff]
    %v232 = vadd.f32 %v36, %v134
    %v233 = vadd.f32 %v37, %v135
    %v234 = vadd.f32 %v38, %v136
    %v235 = vadd.f32 %v39, %v137
    %v236 = vadd.f32 %v40, %v138
    %v237 = vadd.f32 %v41, %v139
    %v238 = vadd.f32 %v42, %v140
    %v239 = vadd.f32 %v43, %v141
    %v240 = vadd.f32 %v44, %v142
    %v241 = vadd.f32 %v45, %v143
    %v242 = vadd.f32 %v46, %v144
    %v243 = vadd.f32 %v47, %v145
    %v244 = vadd.f32 %v48, %v146
    %v245 = vadd.f32 %v49, %v147
    %v246 = vadd.f32 %v50, %v148
    %v247 = vadd.f32 %v51, %v149
    %v248 = vadd.f32 %v52, %v150
    %v249 = vadd.f32 %v53, %v151
    %v250 = vadd.f32 %v54, %v152
    %v251 = vadd.f32 %v55, %v153
    %v252 = vadd.f32 %v56, %v154
    %v253 = vadd.f32 %v57, %v155
    %v254 = vadd.f32 %v58, %v156
    %v255 = vadd.f32 %v59, %v157
    %v256 = vadd.f32 %v60, %v158
    %v257 = vadd.f32 %v61, %v159
    %v258 = vadd.f32 %v62, %v160
    %v259 = vadd.f32 %v63, %v161
    %v260 = vadd.f32 %v64, %v162
    %v261 = vadd.f32 %v65, %v163
    %v262 = vadd.f32 %v66, %v164
    %v263 = vadd.f32 %v67, %v165
    %v264 = vadd.f32 %v68, %v166
    %v265 = vadd.f32 %v69, %v167
    %v266 = vadd.f32 %v70, %v168
    %v267 = vadd.f32 %v71, %v169
    %v268 = vadd.f32 %v72, %v170
    %v269 = vadd.f32 %v73, %v171
    %v270 = vadd.f32 %v74, %v172
    %v271 = vadd.f32 %v75, %v173
    %v272 = vadd.f32 %v76, %v174
    %v273 = vadd.f32 %v77, %v175
    %v274 = vadd.f32 %v78, %v176
    %v275 = vadd.f32 %v79, %v177
    %v276 = vadd.f32 %v80, %v178
    %v277 = vadd.f32 %v81, %v179
    %v278 = vadd.f32 %v82, %v180
    %v279 = vadd.f32 %v83, %v181
    %v280 = vadd.f32 %v84, %v182
    %v281 = vadd.f32 %v85, %v183
    %v282 = vadd.f32 %v86, %v184
    %v283 = vadd.f32 %v87, %v185
    %v284 = vadd.f32 %v88, %v186
    %v285 = vadd.f32 %v89, %v187
    %v286 = vadd.f32 %v90, %v188
    %v287 = vadd.f32 %v91, %v189
    %v288 = vadd.f32 %v92, %v190
    %v289 = vadd.f32 %v93, %v191
    %v290 = vadd.f32 %v94, %v192
    %v291 = vadd.f32 %v95, %v193
    %v292 = vadd.f32 %v96, %v194
    %v293 = vadd.f32 %v97, %v195
    %v294 = vadd.f32 %v98, %v196
    %v295 = vadd.f32 %v99, %v197
    %v296 = vadd.f32 %v100, %v198
    %v297 = vadd.f32 %v101, %v199
    %v298 = vadd.f32 %v102, %v200
    %v299 = vadd.f32 %v103, %v201
    %v300 = vadd.f32 %v104, %v202
    %v301 = vadd.f32 %v105, %v203
    %v302 = vadd.f32 %v106, %v204
    %v303 = vadd.f32 %v107, %v205
    %v304 = vadd.f32 %v108, %v206
    %v305 = vadd.f32 %v109, %v207
    %v306 = vadd.f32 %v110, %v208
    %v307 = vadd.f32 %v111, %v209
    %v308 = vadd.f32 %v112, %v210
    %v309 = vadd.f32 %v113, %v211
    %v310 = vadd.f32 %v114, %v212
    %v311 = vadd.f32 %v115, %v213
    %v312 = vadd.f32 %v116, %v214
    %v313 = vadd.f32 %v117, %v215
    %v314 = vadd.f32 %v118, %v216
    %v315 = vadd.f32 %v119, %v217
    %v316 = vadd.f32 %v120, %v218
    %v317 = vadd.f32 %v121, %v219
    %v318 = vadd.f32 %v122, %v220
    %v319 = vadd.f32 %v123, %v221
    %v320 = vadd.f32 %v124, %v222
    %v321 = vadd.f32 %v125, %v223
    %v322 = vadd.f32 %v126, %v224
    %v323 = vadd.f32 %v127, %v225
    %v324 = vadd.f32 %v128, %v226
    %v325 = vadd.f32 %v129, %v227
    %v326 = vadd.f32 %v130, %v228
    %v327 = vadd.f32 %v131, %v229
    %v328 = vadd.f32 %v132, %v230
    %v329 = vadd.f32 %v133, %v231
    %v330 = vmax.f32 %v232, 0.0
    %v331 = vmax.f32 %v233, 0.0
    %v332 = vmax.f32 %v234, 0.0
    %v333 = vmax.f32 %v235, 0.0
    %v334 = vmax.f32 %v236, 0.0
    %v335 = vmax.f32 %v237, 0.0
    %v336 = vmax.f32 %v238, 0.0
    %v337 = vmax.f32 %v239, 0.0
    %v338 = vmax.f32 %v240, 0.0
    %v339 = vmax.f32 %v241, 0.0
    %v340 = vmax.f32 %v242, 0.0
    %v341 = vmax.f32 %v243, 0.0
    %v342 = vmax.f32 %v244, 0.0
    %v343 = vmax.f32 %v245, 0.0
    %v344 = vmax.f32 %v246, 0.0
    %v345 = vmax.f32 %v247, 0.0
    %v346 = vmax.f32 %v248, 0.0
    %v347 = vmax.f32 %v249, 0.0
    %v348 = vmax.f32 %v250, 0.0
    %v349 = vmax.f32 %v251, 0.0
    %v350 = vmax.f32 %v252, 0.0
    %v351 = vmax.f32 %v253, 0.0
    %v352 = vmax.f32 %v254, 0.0
    %v353 = vmax.f32 %v255, 0.0
    %v354 = vmax.f32 %v256, 0.0
    %v355 = vmax.f32 %v257, 0.0
    %v356 = vmax.f32 %v258, 0.0
    %v357 = vmax.f32 %v259, 0.0
    %v358 = vmax.f32 %v260, 0.0
    %v359 = vmax.f32 %v261, 0.0
    %v360 = vmax.f32 %v262, 0.0
    %v361 = vmax.f32 %v263, 0.0
    %v362 = vmax.f32 %v264, 0.0
    %v363 = vmax.f32 %v265, 0.0
    %v364 = vmax.f32 %v266, 0.0
    %v365 = vmax.f32 %v267, 0.0
    %v366 = vmax.f32 %v268, 0.0
    %v367 = vmax.f32 %v269, 0.0
    %v368 = vmax.f32 %v270, 0.0
    %v369 = vmax.f32 %v271, 0.0
    %v370 = vmax.f32 %v272, 0.0
    %v371 = vmax.f32 %v273, 0.0
    %v372 = vmax.f32 %v274, 0.0
    %v373 = vmax.f32 %v275, 0.0
    %v374 = vmax.f32 %v276, 0.0
    %v375 = vmax.f32 %v277, 0.0
    %v376 = vmax.f32 %v278, 0.0
    %v377 = vmax.f32 %v279, 0.0
    %v378 = vmax.f32 %v280, 0.0
    %v379 = vmax.f32 %v281, 0.0
    %v380 = vmax.f32 %v282, 0.0
    %v381 = vmax.f32 %v283, 0.0
    %v382 = vmax.f32 %v284, 0.0
    %v383 = vmax.f32 %v285, 0.0
    %v384 = vmax.f32 %v286, 0.0
    %v385 = vmax.f32 %v287, 0.0
    %v386 = vmax.f32 %v288, 0.0
    %v387 = vmax.f32 %v289, 0.0
    %v388 = vmax.f32 %v290, 0.0
    %v389 = vmax.f32 %v291, 0.0
    %v390 = vmax.f32 %v292, 0.0
    %v391 = vmax.f32 %v293, 0.0
    %v392 = vmax.f32 %v294, 0.0
    %v393 = vmax.f32 %v295, 0.0
    %v394 = vmax.f32 %v296, 0.0
    %v395 = vmax.f32 %v297, 0.0
    %v396 = vmax.f32 %v298, 0.0
    %v397 = vmax.f32 %v299, 0.0
    %v398 = vmax.f32 %v300, 0.0
    %v399 = vmax.f32 %v301, 0.0
    %v400 = vmax.f32 %v302, 0.0
    %v401 = vmax.f32 %v303, 0.0
    %v402 = vmax.f32 %v304, 0.0
    %v403 = vmax.f32 %v305, 0.0
    %v404 = vmax.f32 %v306, 0.0
    %v405 = vmax.f32 %v307, 0.0
    %v406 = vmax.f32 %v308, 0.0
    %v407 = vmax.f32 %v309, 0.0
    %v408 = vmax.f32 %v310, 0.0
    %v409 = vmax.f32 %v311, 0.0
    %v410 = vmax.f32 %v312, 0.0
    %v411 = vmax.f32 %v313, 0.0
    %v412 = vmax.f32 %v314, 0.0
    %v413 = vmax.f32 %v315, 0.0
    %v414 = vmax.f32 %v316, 0.0
    %v415 = vmax.f32 %v317, 0.0
    %v416 = vmax.f32 %v318, 0.0
    %v417 = vmax.f32 %v319, 0.0
    %v418 = vmax.f32 %v320, 0.0
    %v419 = vmax.f32 %v321, 0.0
    %v420 = vmax.f32 %v322, 0.0
    %v421 = vmax.f32 %v323, 0.0
    %v422 = vmax.f32 %v324, 0.0
    %v423 = vmax.f32 %v325, 0.0
    %v424 = vmax.f32 %v326, 0.0
    %v425 = vmax.f32 %v327, 0.0
    %v426 = vmax.f32 %v328, 0.0
    %v427 = vmax.f32 %v329, 0.0
    %428 = vst [vmem:[#allocation7] sm:$0xff] %v330
    %429 = vst [vmem:[#allocation7 + $0x8] sm:$0xff] %v331
    %430 = vst [vmem:[#allocation7 + $0x10] sm:$0xff] %v332
    %431 = vst [vmem:[#allocation7 + $0x18] sm:$0xff] %v333
    %432 = vst [vmem:[#allocation7 + $0x20] sm:$0xff] %v334
    %433 = vst [vmem:[#allocation7 + $0x28] sm:$0xff] %v335
    %434 = vst [vmem:[#allocation7 + $0x30] sm:$0xff] %v336
    %435 = vst [vmem:[#allocation7 + $0x38] sm:$0xff] %v337
    %436 = vst [vmem:[#allocation7 + $0x40] sm:$0xff] %v338
    %437 = vst [vmem:[#allocation7 + $0x48] sm:$0xff] %v339
    %438 = vst [vmem:[#allocation7 + $0x50] sm:$0xff] %v340
    %439 = vst [vmem:[#allocation7 + $0x58] sm:$0xff] %v341
    %440 = vst [vmem:[#allocation7 + $0x60] sm:$0xff] %v342
    %441 = vst [vmem:[#allocation7 + $0x68] sm:$0xff] %v343
    %442 = vst [vmem:[#allocation7 + $0x70] sm:$0xff] %v344
    %443 = vst [vmem:[#allocation7 + $0x78] sm:$0xff] %v345
    %444 = vst [vmem:[#allocation7 + $0x80] sm:$0xff] %v346
    %445 = vst [vmem:[#allocation7 + $0x88] sm:$0xff] %v347
    %446 = vst [vmem:[#allocation7 + $0x90] sm:$0xff] %v348
    %447 = vst [vmem:[#allocation7 + $0x98] sm:$0xff] %v349
    %448 = vst [vmem:[#allocation7 + $0xa0] sm:$0xff] %v350
    %449 = vst [vmem:[#allocation7 + $0xa8] sm:$0xff] %v351
    %450 = vst [vmem:[#allocation7 + $0xb0] sm:$0xff] %v352
    %451 = vst [vmem:[#allocation7 + $0xb8] sm:$0xff] %v353
    %452 = vst [vmem:[#allocation7 + $0xc0] sm:$0xff] %v354
    %453 = vst [vmem:[#allocation7 + $0xc8] sm:$0xff] %v355
    %454 = vst [vmem:[#allocation7 + $0xd0] sm:$0xff] %v356
    %455 = vst [vmem:[#allocation7 + $0xd8] sm:$0xff] %v357
    %456 = vst [vmem:[#allocation7 + $0xe0] sm:$0xff] %v358
    %457 = vst [vmem:[#allocation7 + $0xe8] sm:$0xff] %v359
    %458 = vst [vmem:[#allocation7 + $0xf0] sm:$0xff] %v360
    %459 = vst [vmem:[#allocation7 + $0xf8] sm:$0xff] %v361
    %460 = vst [vmem:[#allocation7 + $0x100] sm:$0xff] %v362
    %461 = vst [vmem:[#allocation7 + $0x108] sm:$0xff] %v363
    %462 = vst [vmem:[#allocation7 + $0x110] sm:$0xff] %v364
    %463 = vst [vmem:[#allocation7 + $0x118] sm:$0xff] %v365
    %464 = vst [vmem:[#allocation7 + $0x120] sm:$0xff] %v366
    %465 = vst [vmem:[#allocation7 + $0x128] sm:$0xff] %v367
    %466 = vst [vmem:[#allocation7 + $0x130] sm:$0xff] %v368
    %467 = vst [vmem:[#allocation7 + $0x138] sm:$0xff] %v369
    %468 = vst [vmem:[#allocation7 + $0x140] sm:$0xff] %v370
    %469 = vst [vmem:[#allocation7 + $0x148] sm:$0xff] %v371
    %470 = vst [vmem:[#allocation7 + $0x150] sm:$0xff] %v372
    %471 = vst [vmem:[#allocation7 + $0x158] sm:$0xff] %v373
    %472 = vst [vmem:[#allocation7 + $0x160] sm:$0xff] %v374
    %473 = vst [vmem:[#allocation7 + $0x168] sm:$0xff] %v375
    %474 = vst [vmem:[#allocation7 + $0x170] sm:$0xff] %v376
    %475 = vst [vmem:[#allocation7 + $0x178] sm:$0xff] %v377
    %476 = vst [vmem:[#allocation7 + $0x180] sm:$0xff] %v378
    %477 = vst [vmem:[#allocation7 + $0x188] sm:$0xff] %v379
    %478 = vst [vmem:[#allocation7 + $0x190] sm:$0xff] %v380
    %479 = vst [vmem:[#allocation7 + $0x198] sm:$0xff] %v381
    %480 = vst [vmem:[#allocation7 + $0x1a0] sm:$0xff] %v382
    %481 = vst [vmem:[#allocation7 + $0x1a8] sm:$0xff] %v383
    %482 = vst [vmem:[#allocation7 + $0x1b0] sm:$0xff] %v384
    %483 = vst [vmem:[#allocation7 + $0x1b8] sm:$0xff] %v385
    %484 = vst [vmem:[#allocation7 + $0x1c0] sm:$0xff] %v386
    %485 = vst [vmem:[#allocation7 + $0x1c8] sm:$0xff] %v387
    %486 = vst [vmem:[#allocation7 + $0x1d0] sm:$0xff] %v388
    %487 = vst [vmem:[#allocation7 + $0x1d8] sm:$0xff] %v389
    %488 = vst [vmem:[#allocation7 + $0x1e0] sm:$0xff] %v390
    %489 = vst [vmem:[#allocation7 + $0x1e8] sm:$0xff] %v391
    %490 = vst [vmem:[#allocation7 + $0x1f0] sm:$0xff] %v392
    %491 = vst [vmem:[#allocation7 + $0x1f8] sm:$0xff] %v393
    %492 = vst [vmem:[#allocation7 + $0x200] sm:$0xff] %v394
    %493 = vst [vmem:[#allocation7 + $0x208] sm:$0xff] %v395
    %494 = vst [vmem:[#allocation7 + $0x210] sm:$0xff] %v396
    %495 = vst [vmem:[#allocation7 + $0x218] sm:$0xff] %v397
    %496 = vst [vmem:[#allocation7 + $0x220] sm:$0xff] %v398
    %497 = vst [vmem:[#allocation7 + $0x228] sm:$0xff] %v399
    %498 = vst [vmem:[#allocation7 + $0x230] sm:$0xff] %v400
    %499 = vst [vmem:[#allocation7 + $0x238] sm:$0xff] %v401
    %500 = vst [vmem:[#allocation7 + $0x240] sm:$0xff] %v402
    %501 = vst [vmem:[#allocation7 + $0x248] sm:$0xff] %v403
    %502 = vst [vmem:[#allocation7 + $0x250] sm:$0xff] %v404
    %503 = vst [vmem:[#allocation7 + $0x258] sm:$0xff] %v405
    %504 = vst [vmem:[#allocation7 + $0x260] sm:$0xff] %v406
    %505 = vst [vmem:[#allocation7 + $0x268] sm:$0xff] %v407
    %506 = vst [vmem:[#allocation7 + $0x270] sm:$0xff] %v408
    %507 = vst [vmem:[#allocation7 + $0x278] sm:$0xff] %v409
    %508 = vst [vmem:[#allocation7 + $0x280] sm:$0xff] %v410
    %509 = vst [vmem:[#allocation7 + $0x288] sm:$0xff] %v411
    %510 = vst [vmem:[#allocation7 + $0x290] sm:$0xff] %v412
    %511 = vst [vmem:[#allocation7 + $0x298] sm:$0xff] %v413
    %512 = vst [vmem:[#allocation7 + $0x2a0] sm:$0xff] %v414
    %513 = vst [vmem:[#allocation7 + $0x2a8] sm:$0xff] %v415
    %514 = vst [vmem:[#allocation7 + $0x2b0] sm:$0xff] %v416
    %515 = vst [vmem:[#allocation7 + $0x2b8] sm:$0xff] %v417
    %516 = vst [vmem:[#allocation7 + $0x2c0] sm:$0xff] %v418
    %517 = vst [vmem:[#allocation7 + $0x2c8] sm:$0xff] %v419
    %518 = vst [vmem:[#allocation7 + $0x2d0] sm:$0xff] %v420
    %519 = vst [vmem:[#allocation7 + $0x2d8] sm:$0xff] %v421
    %520 = vst [vmem:[#allocation7 + $0x2e0] sm:$0xff] %v422
    %521 = vst [vmem:[#allocation7 + $0x2e8] sm:$0xff] %v423
    %522 = vst [vmem:[#allocation7 + $0x2f0] sm:$0xff] %v424
    %523 = vst [vmem:[#allocation7 + $0x2f8] sm:$0xff] %v425
    %524 = vst [vmem:[#allocation7 + $0x300] sm:$0xff] %v426
    %525 = vst [vmem:[#allocation7 + $0x308] sm:$0xff] %v427
    // Predicated region
    $region18: #{tpu_custom_call.1} parent=1 // pred_check
      _
    $region19: #{tpu_custom_call.1} parent=1 // pred_check_branch
      %527 = sbr.rel (0) target = $region21
    $region20: #{tpu_custom_call.1} parent=1 // pred_region
      %s529 = ssub.s32 12544, 12544
      %530 = vsyncadd [#allocation4], %s529
      %s532 = sshll.u32 [#allocation7], 4
      %s533 = int_to_ptr.vmem [resolvable:$true] %s532
      %535 = dma.vmem_to_hbm [thread:$0]  %s533, 12544, %s2, [#allocation4]
    $region21: #{tpu_custom_call.1} parent=1 // pred_fallthru
      _
    // Predicated region
    $region22: #{tpu_custom_call.1} parent=1 // pred_check
      _
    $region23: #{tpu_custom_call.1} parent=1 // pred_check_branch
      %537 = sbr.rel (0) target = $region25
    $region24: #{tpu_custom_call.1} parent=1 // pred_region
      %538 = dma.done [#allocation4], 12544
    $region25: #{tpu_custom_call.1} parent=1 // pred_fallthru
      _
    %539 = vsyncpa [#allocation3], 1
    %540 = vsyncpa [#allocation6], 1
    %541 = vsyncpa [#allocation4], 1

</llo_original>
